<compile_context>
chip_gen: v5e
topology: v5e:2x2
jax: 0.10.0
libtpu: 0.0.40
codegen_flags: <defaults>
</compile_context>

<pallas_src>
import functools

import jax
import jax.numpy as jnp
from jax.experimental import pallas as pl
from jax.experimental.pallas import tpu as pltpu


def _round_up(x: int, m: int) -> int:
    return (x + m - 1) // m * m


def _vmem_capacity_bytes() -> int:
    """Physical VMEM per TensorCore; conservative fallback if the query fails."""
    try:
        info = pltpu.get_tpu_info()
        cap = int(getattr(info, "vmem_capacity_bytes", 0))
        if cap > 0:
            return cap
    except Exception:
        pass
    return 64 * 1024 * 1024          # v7x per-TC physical (smallest of v5e/v6e/v7x)


def _block_bytes(rows: int, te: int, k_p: int, in_bytes: int, out_bytes: int) -> int:
    """Double-buffered VMEM footprint of one grid step's blocks."""
    rows_l = _round_up(max(rows, 1), 16)          # sublane-layout estimate
    per = (rows_l * k_p * in_bytes                # xp tile   (bf16)
           + k_p * te * in_bytes                  # weight    (bf16)
           + rows_l * te * 4                      # add tile  (f32)
           + rows_l * te * out_bytes)             # out tile
    return 2 * per


def _patch_embed_kernel(xp_ref, w_ref, add_ref, o_ref):
    # xp_ref:  (rows, Kp)  flattened patch pixels; row 0 of each batch is a zero
    #                      "cls" slot so the kernel emits the final layout.
    # w_ref:   (Kp, te)    conv weight, pre-transposed once on the host.
    # add_ref: (rows, te)  f32: row 0 = cls + pos[0]; rows 1.. = pos[1:] + bias.
    # o_ref:   (rows, te)
    acc = jnp.dot(xp_ref[...], w_ref[...], preferred_element_type=jnp.float32)
    o_ref[...] = (acc + add_ref[...]).astype(o_ref.dtype)


def patch_embedding_forward(x, conv_w, conv_b, cls_token, positions,
                            patch_size, *, use_bf16=True, out_dtype=None):
    """x: (b, C, H, W) NCHW. Returns (b, N+1, E) = [cls ; proj(patches)] + pos."""
    b, c, h, w = x.shape
    p = patch_size
    assert h % p == 0 and w % p == 0, "H/W must be divisible by patch_size"
    nh, nw = h // p, w // p
    n = nh * nw                      # patch tokens
    e = conv_w.shape[0]              # embedding dim
    k = c * p * p                    # flattened patch pixels
    ntok = n + 1                     # + cls token
    out_dtype = x.dtype if out_dtype is None else jnp.dtype(out_dtype)

    # TODO(synk): bf16 MXU inputs (f32 accumulation, f32 add) are a small
    # numerics change vs the fp32 PyTorch reference; flagged for the owner.
    mm_dtype = jnp.bfloat16 if use_bf16 else x.dtype
    in_bytes = jnp.dtype(mm_dtype).itemsize
    out_bytes = jnp.dtype(out_dtype).itemsize

    # ---- tile / padding selection (VMEM-budget-driven, MXU/(8,128) friendly) -
    k_p = _round_up(k, 128)                       # contraction dim, untiled
    e_p = _round_up(e, 128)                       # lane-dense output columns
    cap = _vmem_capacity_bytes()
    budget = int(cap * 0.7)                       # headroom for internal scratch

    te = e_p                                      # prefer full-E weight residency
    probe_rows = min(ntok, 512)
    if _block_bytes(probe_rows, te, k_p, in_bytes, out_bytes) > budget:
        if e_p % 256 == 0 and _block_bytes(probe_rows, 256, k_p, in_bytes, out_bytes) <= budget:
            te = 256
        else:
            te = 128

    # v7x has 2 TensorCores: guarantee >=2 parallel grid units when b == 1.
    want_row_split = (b == 1 and (e_p // te) == 1 and ntok >= 64)

    if (ntok <= 1024 and not want_row_split
            and _block_bytes(ntok, te, k_p, in_bytes, out_bytes) <= budget):
        # Full sequence per block: no row padding, no post-kernel row slice.
        rows_blk, n_rows = ntok, ntok
    else:
        tn = 512
        if want_row_split:
            tn = min(tn, _round_up(-(-ntok // 2), 16))
        while tn > 16 and _block_bytes(tn, te, k_p, in_bytes, out_bytes) > budget:
            tn = _round_up(tn // 2, 16)
        tn = max(tn, 16)
        rows_blk, n_rows = tn, _round_up(ntok, tn)

    # ---- glue: im2col patchify (== Conv2d(kernel=stride=p) + Rearrange) -----
    # One fused XLA pass: reshape/transpose/pad/cast.  Row 0 of each batch is a
    # zero "cls" slot; rows are padded to n_rows, K to k_p.
    # TODO(synk): fusing this pass into the Pallas input DMA (allow_input_fusion
    # or in-kernel patchify) would remove one HBM read of x + write of xp; left
    # out for lowering safety across generations.
    xp = x.reshape(b, c, nh, p, nw, p).transpose(0, 2, 4, 1, 3, 5).reshape(b, n, k)
    xp = jnp.pad(xp, ((0, 0), (1, n_rows - ntok), (0, k_p - k))).astype(mm_dtype)

    # Conv weight (E,C,P,P) -> (K,E): one-time tiny host transpose (few MB max).
    w_mat = jnp.pad(conv_w.reshape(e, k).T,
                    ((0, k_p - k), (0, e_p - e))).astype(mm_dtype)

    # Fold bias + positional embedding + cls token into one f32 additive term.
    add = jnp.concatenate(
        [cls_token.reshape(1, e) + positions[0:1],
         positions[1:] + conv_b[None, :]], axis=0).astype(jnp.float32)
    add = jnp.pad(add, ((0, n_rows - ntok), (0, e_p - e)))

    # Batch innermost: weight (je-only) and add ((jn,je)-only) blocks keep the
    # same index across the batch loop -> revisited, no re-DMA.
    grid = (n_rows // rows_blk, e_p // te, b)

    needed = _block_bytes(rows_blk, te, k_p, in_bytes, out_bytes)
    vmem_limit = int(min(cap * 0.9, max(needed * 2, 32 * 1024 * 1024)))

    flops = 2 * b * n_rows * k_p * e_p
    bytes_accessed = (xp.size * xp.dtype.itemsize
                      + w_mat.size * w_mat.dtype.itemsize
                      + add.size * 4
                      + b * n_rows * e_p * out_bytes)

    out = pl.pallas_call(
        _patch_embed_kernel,
        out_shape=jax.ShapeDtypeStruct((b, n_rows, e_p), out_dtype),
        grid_spec=pltpu.PrefetchScalarGridSpec(
            num_scalar_prefetch=0,
            grid=grid,
            in_specs=[
                pl.BlockSpec((pl.Squeezed(), rows_blk, k_p),
                             lambda jn, je, ib: (ib, jn, 0)),
                pl.BlockSpec((k_p, te), lambda jn, je, ib: (0, je)),
                pl.BlockSpec((rows_blk, te), lambda jn, je, ib: (jn, je)),
            ],
            out_specs=pl.BlockSpec((pl.Squeezed(), rows_blk, te),
                                   lambda jn, je, ib: (ib, jn, je)),
        ),
        compiler_params=pltpu.CompilerParams(
            dimension_semantics=("parallel", "parallel", "parallel"),
            vmem_limit_bytes=vmem_limit,
        ),
        cost_estimate=pl.CostEstimate(flops=int(flops), transcendentals=0,
                                      bytes_accessed=int(bytes_accessed)),
    )(xp, w_mat, add)

    # Only slice when padding was actually required (not on the common path
    # where e % 128 == 0 and the full sequence fits one block).
    if n_rows != ntok or e_p != e:
        out = out[:, :ntok, :e]
    return out


if __name__ == "__main__":
    # Small shapes consistent with the module:
    # batch=2, in_channels=4, img_size=16, patch_size=4 -> N=16, emb_size=32
    batch = 2
    in_channels = 4
    img_size = 16
    patch_size = 4
    emb_size = 32
    n_patches = (img_size // patch_size) ** 2

    key = jax.random.PRNGKey(0)
    kx, kw, kb, kc, kp = jax.random.split(key, 5)

    x = jax.random.normal(kx, (batch, in_channels, img_size, img_size), jnp.float32)
    conv_w = jax.random.normal(
        kw, (emb_size, in_channels, patch_size, patch_size), jnp.float32)
    conv_b = jax.random.normal(kb, (emb_size,), jnp.float32)
    cls_token = jax.random.normal(kc, (1, 1, emb_size), jnp.float32)
    positions = jax.random.normal(kp, (n_patches + 1, emb_size), jnp.float32)

    fwd = jax.jit(functools.partial(patch_embedding_forward,
                                    patch_size=patch_size))
    out = jax.block_until_ready(fwd(x, conv_w, conv_b, cls_token, positions))

    # ---- reference checks (plain JAX, same math as the PyTorch forward) ----
    xp_r = x.reshape(batch, in_channels, img_size // patch_size, patch_size,
                     img_size // patch_size, patch_size)
    xp_r = xp_r.transpose(0, 2, 4, 1, 3, 5).reshape(batch, n_patches, -1)
    w_r = conv_w.reshape(emb_size, -1)

    # (a) exact semantics check, emulating the kernel's bf16 input rounding
    xp_b = xp_r.astype(jnp.bfloat16).astype(jnp.float32)
    w_b = w_r.astype(jnp.bfloat16).astype(jnp.float32)
    proj_b = jnp.einsum('bnk,ek->bne', xp_b, w_b,
                        precision=jax.lax.Precision.HIGHEST) + conv_b
    ref_b = jnp.concatenate(
        [jnp.broadcast_to(cls_token, (batch, 1, emb_size)), proj_b], axis=1
    ) + positions

    # (b) loose check vs the full-fp32 reference (bf16 matmul numerics)
    proj_f = jnp.einsum('bnk,ek->bne', xp_r, w_r,
                        precision=jax.lax.Precision.HIGHEST) + conv_b
    ref_f = jnp.concatenate(
        [jnp.broadcast_to(cls_token, (batch, 1, emb_size)), proj_f], axis=1
    ) + positions

    assert out.shape == (batch, n_patches + 1, emb_size)
    assert jnp.allclose(out, ref_b, atol=1e-3, rtol=1e-3)
    assert jnp.allclose(out, ref_f, atol=2e-1, rtol=5e-2)

    print("KERNEL_OK")
</pallas_src>

<mosaic_0001>
module attributes {stable_mosaic.version = 11 : i64} {
  func.func @_patch_embed_kernel(%arg0: i32, %arg1: i32, %arg2: i32, %arg3: memref<1x17x128xbf16, #tpu.memory_space<vmem>>, %arg4: memref<128x128xbf16, #tpu.memory_space<vmem>>, %arg5: memref<17x128xf32, #tpu.memory_space<vmem>>, %arg6: memref<1x17x128xf32, #tpu.memory_space<vmem>>) attributes {dimension_semantics = [#tpu.dimension_semantics<parallel>, #tpu.dimension_semantics<parallel>, #tpu.dimension_semantics<parallel>], iteration_bounds = array<i64: 1, 1, 2>, scalar_prefetch = 0 : i64, scratch_operands = 0 : i64, tpu.core_type = #tpu.core_type<tc>, window_params = [{transform_indices = @transform_0, window_bounds = array<i64: 1, 17, 128>}, {transform_indices = @transform_1, window_bounds = array<i64: 128, 128>}, {transform_indices = @transform_2, window_bounds = array<i64: 17, 128>}, {transform_indices = @transform_3, window_bounds = array<i64: 1, 17, 128>}]} {
    %c0 = arith.constant 0 : index
    %c0_0 = arith.constant 0 : index
    %c0_1 = arith.constant 0 : index
    %0 = vector.load %arg3[%c0, %c0_0, %c0_1] : memref<1x17x128xbf16, #tpu.memory_space<vmem>>, vector<1x17x128xbf16>
    %1 = vector.shape_cast %0 : vector<1x17x128xbf16> to vector<17x128xbf16>
    %c0_2 = arith.constant 0 : index
    %c0_3 = arith.constant 0 : index
    %2 = vector.load %arg4[%c0_2, %c0_3] : memref<128x128xbf16, #tpu.memory_space<vmem>>, vector<128x128xbf16>
    %cst = arith.constant dense<0.000000e+00> : vector<17x128xf32>
    %3 = tpu.matmul %1, %2, %cst {dimension_numbers = #tpu.dot_dimension_numbers<[1], [0], [0], [1], [0, 0, 1, 1], [], []>} : vector<17x128xbf16>, vector<128x128xbf16>, vector<17x128xf32> -> vector<17x128xf32>
    %c0_4 = arith.constant 0 : index
    %c0_5 = arith.constant 0 : index
    %4 = vector.load %arg5[%c0_4, %c0_5] : memref<17x128xf32, #tpu.memory_space<vmem>>, vector<17x128xf32>
    %5 = arith.addf %3, %4 : vector<17x128xf32>
    %c0_6 = arith.constant 0 : index
    %c0_7 = arith.constant 0 : index
    %c0_8 = arith.constant 0 : index
    %6 = vector.load %arg6[%c0_6, %c0_7, %c0_8] : memref<1x17x128xf32, #tpu.memory_space<vmem>>, vector<1x17x128xf32>
    %7 = vector.shape_cast %6 : vector<1x17x128xf32> to vector<17x128xf32>
    %8 = vector.shape_cast %5 : vector<17x128xf32> to vector<1x17x128xf32>
    tpu.vector_store %arg6[%c0_6, %c0_7, %c0_8], %8 {strides = array<i32>} : memref<1x17x128xf32, #tpu.memory_space<vmem>>, vector<1x17x128xf32>,
    return
  }
  func.func @transform_0(%arg0: i32, %arg1: i32, %arg2: i32) -> (i32, i32, i32) {
    %c0_i32 = arith.constant 0 : i32
    %c0_i32_0 = arith.constant 0 : i32
    return %arg2, %arg0, %c0_i32 : i32, i32, i32
  }
  func.func @transform_1(%arg0: i32, %arg1: i32, %arg2: i32) -> (i32, i32) {
    %c0_i32 = arith.constant 0 : i32
    %c0_i32_0 = arith.constant 0 : i32
    return %c0_i32, %arg1 : i32, i32
  }
  func.func @transform_2(%arg0: i32, %arg1: i32, %arg2: i32) -> (i32, i32) {
    %c0_i32 = arith.constant 0 : i32
    return %arg0, %arg1 : i32, i32
  }
  func.func @transform_3(%arg0: i32, %arg1: i32, %arg2: i32) -> (i32, i32, i32) {
    %c0_i32 = arith.constant 0 : i32
    return %arg2, %arg0, %arg1 : i32, i32, i32
  }
}

</mosaic_0001>

<llo_original>
// kernel: patch_embedding_forward.1
$region0: #{patch_embedding_forward.1}
  #allocation0 [shape = 'u32[]', space=smem, size = 0x4, offset = 0x4, fixed_abs, tag = 'smem constant byte address 0x4 - core index']
  #allocation1 [shape = 'u32[72,128]{1,0:T(1,128)}', space=vmem, size = 0x9000, scoped, tag = 'internal scratch']
  %s0 = inlined_call_operand.vmem [shape: bf16[2,17,128], index: 0, kind: input, shape index: {}]
  %s1 = inlined_call_operand.vmem [shape: bf16[128,128], index: 1, kind: input, shape index: {}]
  %s2 = inlined_call_operand.vmem [shape: f32[17,128], index: 2, kind: input, shape index: {}]
  %s3 = inlined_call_operand.vmem [shape: f32[2,17,128], index: 3, kind: output, shape index: {}]
  %s4 = sld [smem:[#allocation0]]
  $region45: #{patch_embedding_forward.1} parent=0
    _
  %s6 = ssub.s32 1, %s4
  %s7 = scalar_select 0, %s6, %s4
  loop: start=0, step=1, limit=4
  $region2: #{patch_embedding_forward.1} parent=0 // loop_pre_header
    _
  $region3: #{patch_embedding_forward.1} parent=0 // loop_header
    %s9 = sphi 0, %s13
    %p10 = scmp.ge.s32.totalorder %s9, 4
    %s16 = sphi 0, %s35
    %s17 = sphi 0, %s31
    %s18 = sphi 0, %s27
    %s19 = sphi 0, %s16
    %s20 = sphi 0, %s17
    %s21 = sphi 0, %s18
    %s22 = sphi 0, %s19
    %s23 = sphi 0, %s20
    %s24 = sphi 0, %s21
    %s40 = sphi 0, %s42
    %s43 = sphi 0, %s40
    %s44 = sphi 0, %s43
    %s60 = sphi 0, %s44
    %s66 = sphi 0, %s68
    %s69 = sphi 0, %s66
    %s70 = sphi 0, %s69
    %s86 = sphi 0, %s70
    %s94 = sphi 0, %s96
    %s97 = sphi 0, %s94
    %s98 = sphi 0, %s97
    %s114 = sphi 0, %s98
    %s124 = sphi 0, %s126
    %s127 = sphi 0, %s124
    %s128 = sphi 0, %s127
    %s144 = sphi 0, %s128
  $region4: #{patch_embedding_forward.1} parent=0 // loop_header_branch
    %12 = sbr.rel (%p10) target = $region8
  $region5: #{patch_embedding_forward.1} parent=0 // loop_body
    %s14 = ssub.s32 %s9, 1
    %s15 = ssub.s32 %s9, 2
    %s25 = sadd.s32 1, %s18
    %p26 = scmp.ge.s32.totalorder %s25, 2
    %s27 = scalar_select %p26, 0, %s25
    %s28 = sadd.s32 1, %s17
    %s29 = scalar_select %p26, %s28, %s17
    %p30 = scmp.ge.s32.totalorder %s29, 1
    %s31 = scalar_select %p30, 0, %s29
    %s32 = sadd.s32 1, %s16
    %s33 = scalar_select %p30, %s32, %s16
    %p34 = scmp.ge.s32.totalorder %s33, 1
    %s35 = scalar_select %p34, 0, %s33
    %s36 = ssub.s32 %s18, %s27
    %s37 = ssub.s32 %s16, %s35
    %s38 = sor.u32 %s36, %s37
    %p39 = scmp.eq.s32.totalorder %s38, 0
    %s41 = sadd.s32 %s40, 1
    %s42 = scalar_select %p39, %s40, %s41
    %p45 = pneg %p39
    %p46 = scmp.eq.s32.totalorder %s9, 1
    %p47 = por %p45, %p46
    %p48 = scmp.ne.s32.totalorder %s40, %s43
    %p49 = scmp.eq.s32.totalorder %s9, 0
    %p50 = por %p48, %p49
    %p51 = scmp.ne.s32.totalorder %s40, %s43
    %p52 = scmp.eq.s32.totalorder %s14, 1
    %p53 = por %p51, %p52
    %p54 = scmp.ne.s32.totalorder %s43, %s44
    %p55 = scmp.eq.s32.totalorder %s14, 0
    %p56 = por %p54, %p55
    %p57 = scmp.ne.s32.totalorder %s43, %s44
    %p58 = scmp.eq.s32.totalorder %s15, 1
    %p59 = por %p57, %p58
    %p61 = scmp.ne.s32.totalorder %s44, %s60
    %p62 = scmp.eq.s32.totalorder %s15, 0
    %p63 = por %p61, %p62
    %s64 = ssub.s32 %s17, %s31
    %p65 = scmp.eq.s32.totalorder %s64, 0
    %s67 = sadd.s32 %s66, 1
    %s68 = scalar_select %p65, %s66, %s67
    %p71 = pneg %p65
    %p72 = scmp.eq.s32.totalorder %s9, 1
    %p73 = por %p71, %p72
    %p74 = scmp.ne.s32.totalorder %s66, %s69
    %p75 = scmp.eq.s32.totalorder %s9, 0
    %p76 = por %p74, %p75
    %p77 = scmp.ne.s32.totalorder %s66, %s69
    %p78 = scmp.eq.s32.totalorder %s14, 1
    %p79 = por %p77, %p78
    %p80 = scmp.ne.s32.totalorder %s69, %s70
    %p81 = scmp.eq.s32.totalorder %s14, 0
    %p82 = por %p80, %p81
    %p83 = scmp.ne.s32.totalorder %s69, %s70
    %p84 = scmp.eq.s32.totalorder %s15, 1
    %p85 = por %p83, %p84
    %p87 = scmp.ne.s32.totalorder %s70, %s86
    %p88 = scmp.eq.s32.totalorder %s15, 0
    %p89 = por %p87, %p88
    %s90 = ssub.s32 %s16, %s35
    %s91 = ssub.s32 %s17, %s31
    %s92 = sor.u32 %s90, %s91
    %p93 = scmp.eq.s32.totalorder %s92, 0
    %s95 = sadd.s32 %s94, 1
    %s96 = scalar_select %p93, %s94, %s95
    %p99 = pneg %p93
    %p100 = scmp.eq.s32.totalorder %s9, 1
    %p101 = por %p99, %p100
    %p102 = scmp.ne.s32.totalorder %s94, %s97
    %p103 = scmp.eq.s32.totalorder %s9, 0
    %p104 = por %p102, %p103
    %p105 = scmp.ne.s32.totalorder %s94, %s97
    %p106 = scmp.eq.s32.totalorder %s14, 1
    %p107 = por %p105, %p106
    %p108 = scmp.ne.s32.totalorder %s97, %s98
    %p109 = scmp.eq.s32.totalorder %s14, 0
    %p110 = por %p108, %p109
    %p111 = scmp.ne.s32.totalorder %s97, %s98
    %p112 = scmp.eq.s32.totalorder %s15, 1
    %p113 = por %p111, %p112
    %p115 = scmp.ne.s32.totalorder %s98, %s114
    %p116 = scmp.eq.s32.totalorder %s15, 0
    %p117 = por %p115, %p116
    %s118 = ssub.s32 %s18, %s27
    %s119 = ssub.s32 %s16, %s35
    %s120 = sor.u32 %s118, %s119
    %s121 = ssub.s32 %s17, %s31
    %s122 = sor.u32 %s120, %s121
    %p123 = scmp.eq.s32.totalorder %s122, 0
    %s125 = sadd.s32 %s124, 1
    %s126 = scalar_select %p123, %s124, %s125
    %p129 = pneg %p123
    %p130 = scmp.eq.s32.totalorder %s9, 1
    %p131 = por %p129, %p130
    %p132 = scmp.ne.s32.totalorder %s124, %s127
    %p133 = scmp.eq.s32.totalorder %s9, 0
    %p134 = por %p132, %p133
    %p135 = scmp.ne.s32.totalorder %s124, %s127
    %p136 = scmp.eq.s32.totalorder %s14, 1
    %p137 = por %p135, %p136
    %p138 = scmp.ne.s32.totalorder %s127, %s128
    %p139 = scmp.eq.s32.totalorder %s14, 0
    %p140 = por %p138, %p139
    %p141 = scmp.ne.s32.totalorder %s127, %s128
    %p142 = scmp.eq.s32.totalorder %s15, 1
    %p143 = por %p141, %p142
    %p145 = scmp.ne.s32.totalorder %s128, %s144
    %p146 = scmp.eq.s32.totalorder %s15, 0
    %p147 = por %p145, %p146
    %p148 = scmp.le.s32.totalorder 1, %s9
    %p149 = scmp.lt.s32.totalorder %s9, 3
    %p150 = pnand %p148, %p149
    %p151 = pneg %p150
    // Predicated region
    $region9: #{patch_embedding_forward.1} parent=5 // pred_check
      _
    $region10: #{patch_embedding_forward.1} parent=5 // pred_check_branch
      %153 = sbr.rel (%p150) target = $region12
    $region11: #{patch_embedding_forward.1} parent=5 // pred_region
      %s154 = ssub.s32 %s9, 1
      // Predicated region
      $region13: #{patch_embedding_forward.1} parent=11 // pred_check
        %p155 = pneg %p82
      $region14: #{patch_embedding_forward.1} parent=11 // pred_check_branch
        %157 = sbr.rel (%p155) target = $region16
      $region15: #{patch_embedding_forward.1} parent=11 // pred_region
        %p158 = scmp.lt.s32.totalorder %s20, 0
        %s159 = scalar_select %p158, %s20, 0
        %s160 = smul.addr %s159, 4
        %s161 = scalar_lea.vmem %s1, %s160
      $region16: #{patch_embedding_forward.1} parent=11 // pred_fallthru
        _
      // Predicated region
      $region17: #{patch_embedding_forward.1} parent=11 // pred_check
        %p162 = pneg %p110
      $region18: #{patch_embedding_forward.1} parent=11 // pred_check_branch
        %164 = sbr.rel (%p162) target = $region20
      $region19: #{patch_embedding_forward.1} parent=11 // pred_region
        %s165 = smul.u32 3, %s19
        %p166 = scmp.lt.s32.totalorder %s165, 2
        %s167 = scalar_select %p166, %s165, 2
        %p168 = scmp.lt.s32.totalorder %s20, 0
        %s169 = scalar_select %p168, %s20, 0
        %s170 = sadd.s32 %s169, %s167
        %s171 = smul.addr %s170, 8
        %s172 = scalar_lea.vmem %s2, %s171
        %s173 = smul.u32 3, %s19
      $region20: #{patch_embedding_forward.1} parent=11 // pred_fallthru
        _
    $region12: #{patch_embedding_forward.1} parent=5 // pred_fallthru
      _
    %p174 = scmp.lt.s32.totalorder %s9, 2
    // Predicated region
    $region21: #{patch_embedding_forward.1} parent=5 // pred_check
      %p175 = pneg %p174
    $region22: #{patch_embedding_forward.1} parent=5 // pred_check_branch
      %177 = sbr.rel (%p175) target = $region24
    $region23: #{patch_embedding_forward.1} parent=5 // pred_region
      // Predicated region
      $region25: #{patch_embedding_forward.1} parent=23 // pred_check
        %p178 = pneg %p50
      $region26: #{patch_embedding_forward.1} parent=23 // pred_check_branch
        %180 = sbr.rel (%p178) target = $region28
      $region27: #{patch_embedding_forward.1} parent=23 // pred_region
        %s181 = smul.u32 3, %s16
        %p182 = scmp.lt.s32.totalorder %s18, 1
        %s183 = scalar_select %p182, %s18, 1
        %p184 = scmp.lt.s32.totalorder %s181, 2
        %s185 = scalar_select %p184, %s181, 2
        %s186 = smul.addr %s183, 3
        %s187 = sadd.s32 %s185, %s186
        %s188 = smul.addr %s187, 4
        %s189 = scalar_lea.vmem %s0, %s188
        %s190 = smul.u32 3, %s16
      $region28: #{patch_embedding_forward.1} parent=23 // pred_fallthru
        _
    $region24: #{patch_embedding_forward.1} parent=5 // pred_fallthru
      _
    %p191 = scmp.le.s32.totalorder 1, %s9
    %p192 = scmp.lt.s32.totalorder %s9, 3
    %p193 = pnand %p191, %p192
    %p194 = pneg %p193
    // Predicated region
    $region29: #{patch_embedding_forward.1} parent=5 // pred_check
      _
    $region30: #{patch_embedding_forward.1} parent=5 // pred_check_branch
      %196 = sbr.rel (%p193) target = $region32
    $region31: #{patch_embedding_forward.1} parent=5 // pred_region
      %s197 = ssub.s32 %s9, 1
      %s198 = smul.u32 3, %s19
      %p199 = scmp.lt.s32.totalorder %s21, 1
      %s200 = scalar_select %p199, %s21, 1
      %p201 = scmp.lt.s32.totalorder %s198, 2
      %s202 = scalar_select %p201, %s198, 2
      %s203 = smul.addr %s200, 3
      %s204 = sadd.s32 %s202, %s203
      %s205 = smul.addr %s204, 4
      %s206 = scalar_lea.vmem %s0, %s205
      %p207 = pneg %p56
      %p208 = pneg %p53
      %p209 = scmp.lt.s32.totalorder %s20, 0
      %s210 = scalar_select %p209, %s20, 0
      %s211 = smul.addr %s210, 4
      %s212 = scalar_lea.vmem %s1, %s211
      %p213 = pneg %p82
      %p214 = pneg %p79
      %s215 = smul.u32 3, %s19
      %p216 = scmp.lt.s32.totalorder %s215, 2
      %s217 = scalar_select %p216, %s215, 2
      %p218 = scmp.lt.s32.totalorder %s20, 0
      %s219 = scalar_select %p218, %s20, 0
      %s220 = sadd.s32 %s219, %s217
      %s221 = smul.addr %s220, 8
      %s222 = scalar_lea.vmem %s2, %s221
      %p223 = pneg %p110
      %p224 = pneg %p107
      %p225 = pneg %p140
      %p226 = pneg %p137
      %s227 = smul.u32 3, %s19
      %p228 = scmp.lt.s32.totalorder %s21, 1
      %s229 = scalar_select %p228, %s21, 1
      %p230 = scmp.lt.s32.totalorder %s227, 2
      %s231 = scalar_select %p230, %s227, 2
      %p232 = scmp.lt.s32.totalorder %s20, 0
      %s233 = scalar_select %p232, %s20, 0
      %s234 = sadd.s32 %s233, %s231
      %s235 = smul.addr %s229, 3
      %s236 = sadd.s32 %s234, %s235
      %s237 = smul.addr %s236, 8
      %s238 = scalar_lea.vmem %s3, %s237
      %s239 = smul.u32 3, %s19
      %p240 = scmp.lt.s32.totalorder %s21, 1
      %s241 = scalar_select %p240, %s21, 1
      %p242 = scmp.lt.s32.totalorder %s239, 2
      %s243 = scalar_select %p242, %s239, 2
      %s244 = smul.addr %s241, 3
      %s245 = sadd.s32 %s243, %s244
      %s246 = smul.addr %s245, 4
      %s247 = scalar_lea.vmem %s0, %s246
      %s248 = smul.u32 3, %s19
      %p249 = scmp.lt.s32.totalorder %s20, 0
      %s250 = scalar_select %p249, %s20, 0
      %s251 = smul.addr %s250, 4
      %s252 = scalar_lea.vmem %s1, %s251
      %s253 = smul.u32 3, %s19
      %p254 = scmp.lt.s32.totalorder %s253, 2
      %s255 = scalar_select %p254, %s253, 2
      %p256 = scmp.lt.s32.totalorder %s20, 0
      %s257 = scalar_select %p256, %s20, 0
      %s258 = sadd.s32 %s257, %s255
      %s259 = smul.addr %s258, 8
      %s260 = scalar_lea.vmem %s2, %s259
      %s261 = smul.u32 3, %s19
      %s262 = smul.u32 3, %s19
      %p263 = scmp.lt.s32.totalorder %s21, 1
      %s264 = scalar_select %p263, %s21, 1
      %p265 = scmp.lt.s32.totalorder %s262, 2
      %s266 = scalar_select %p265, %s262, 2
      %p267 = scmp.lt.s32.totalorder %s20, 0
      %s268 = scalar_select %p267, %s20, 0
      %s269 = sadd.s32 %s268, %s266
      %s270 = smul.addr %s264, 3
      %s271 = sadd.s32 %s269, %s270
      %s272 = smul.addr %s271, 8
      %s273 = scalar_lea.vmem %s3, %s272
      %s274 = smul.u32 3, %s19
      %v275 = vld [vmem:[%s247] sm:$0xf]
      %v276 = vld [vmem:[%s247 + $0x4] sm:$0xf]
      %v277 = vld [vmem:[%s247 + $0x8] sm:$0x1]
      %v278 = vld [vmem:[%s252] sm:$0xf]
      %v279 = vld [vmem:[%s252 + $0x4] sm:$0xf]
      %v280 = vld [vmem:[%s252 + $0x8] sm:$0xf]
      %v281 = vld [vmem:[%s252 + $0xc] sm:$0xf]
      %v282 = vld [vmem:[%s252 + $0x10] sm:$0xf]
      %v283 = vld [vmem:[%s252 + $0x14] sm:$0xf]
      %v284 = vld [vmem:[%s252 + $0x18] sm:$0xf]
      %v285 = vld [vmem:[%s252 + $0x1c] sm:$0xf]
      %v286 = vld [vmem:[%s252 + $0x20] sm:$0xf]
      %v287 = vld [vmem:[%s252 + $0x24] sm:$0xf]
      %v288 = vld [vmem:[%s252 + $0x28] sm:$0xf]
      %v289 = vld [vmem:[%s252 + $0x2c] sm:$0xf]
      %v290 = vld [vmem:[%s252 + $0x30] sm:$0xf]
      %v291 = vld [vmem:[%s252 + $0x34] sm:$0xf]
      %v292 = vld [vmem:[%s252 + $0x38] sm:$0xf]
      %v293 = vld [vmem:[%s252 + $0x3c] sm:$0xf]
      %v294 = vld [vmem:[%s260] sm:$0xff]
      %v295 = vld [vmem:[%s260 + $0x8] sm:$0xff]
      %v296 = vld [vmem:[%s260 + $0x10] sm:$0x1]
      %v300 = vunpack.c.l.b16 %v275
      %v301 = vunpack.c.l.b16 %v276
      %v302 = vunpack.c.l.b16 %v277
      %v303 = vpack.c.b16 %v301, %v300
      %v304 = vpack.c.b16 %v302, %v302
      %v323 = vunpack.c.l.b16 %v278
      %v324 = vunpack.c.l.b16 %v279
      %v325 = vunpack.c.l.b16 %v280
      %v326 = vunpack.c.l.b16 %v281
      %v327 = vunpack.c.l.b16 %v282
      %v328 = vunpack.c.l.b16 %v283
      %v329 = vunpack.c.l.b16 %v284
      %v330 = vunpack.c.l.b16 %v285
      %v331 = vunpack.c.l.b16 %v286
      %v332 = vunpack.c.l.b16 %v287
      %v333 = vunpack.c.l.b16 %v288
      %v334 = vunpack.c.l.b16 %v289
      %v335 = vunpack.c.l.b16 %v290
      %v336 = vunpack.c.l.b16 %v291
      %v337 = vunpack.c.l.b16 %v292
      %v338 = vunpack.c.l.b16 %v293
      %v339 = vpack.c.b16 %v324, %v323
      %v340 = vpack.c.b16 %v326, %v325
      %v341 = vpack.c.b16 %v328, %v327
      %v342 = vpack.c.b16 %v330, %v329
      %v343 = vpack.c.b16 %v332, %v331
      %v344 = vpack.c.b16 %v334, %v333
      %v345 = vpack.c.b16 %v336, %v335
      %v346 = vpack.c.b16 %v338, %v337
      %355 = vmatpush.bf16.msra.mxu0 %v346
      %356 = vmatpush.bf16.msra.mxu0 %v345
      %357 = vmatpush.bf16.msra.mxu0 %v344
      %358 = vmatpush.bf16.msra.mxu0 %v343
      %359 = vmatpush.bf16.msra.mxu0 %v342
      %360 = vmatpush.bf16.msra.mxu0 %v341
      %361 = vmatpush.bf16.msra.mxu0 %v340
      %362 = vmatpush.bf16.msra.mxu0 %v339
      %363 = vmatmul.bf16.gmra.mxu0 %v303
      %v364 = vpop.f32.mrf.mxu0
      %v365 = vadd.f32 %v294, %v364
      %v366 = vpop.f32.mrf.mxu0
      %v367 = vadd.f32 %v295, %v366
      %368 = vmatmul.bf16.gmra.mxu0 %v304
      %v369 = vpop.f32.mrf.mxu0
      %v370 = vadd.f32 %v296, %v369
      %v371 = vpop.f32.mrf.mxu0
      %372 = vdwg.mxu0
      %373 = vst [vmem:[%s273] sm:$0xff] %v365
      %374 = vst [vmem:[%s273 + $0x8] sm:$0xff] %v367
      %375 = vst [vmem:[%s273 + $0x10] sm:$0x1] %v370
      %s376 = smul.u32 3, %s19
      %p377 = scmp.lt.s32.totalorder %s21, 1
      %s378 = scalar_select %p377, %s21, 1
      %p379 = scmp.lt.s32.totalorder %s376, 2
      %s380 = scalar_select %p379, %s376, 2
      %p381 = scmp.lt.s32.totalorder %s20, 0
      %s382 = scalar_select %p381, %s20, 0
      %s383 = sadd.s32 %s382, %s380
      %s384 = smul.addr %s378, 3
      %s385 = sadd.s32 %s383, %s384
      %s386 = smul.addr %s385, 8
      %s387 = scalar_lea.vmem %s3, %s386
      // Predicated region
      $region33: #{patch_embedding_forward.1} parent=31 // pred_check
        %p388 = pneg %p137
      $region34: #{patch_embedding_forward.1} parent=31 // pred_check_branch
        %390 = sbr.rel (%p388) target = $region36
      $region35: #{patch_embedding_forward.1} parent=31 // pred_region
        %s391 = smul.u32 3, %s19
      $region36: #{patch_embedding_forward.1} parent=31 // pred_fallthru
        _
    $region32: #{patch_embedding_forward.1} parent=5 // pred_fallthru
      _
    %p392 = scmp.le.s32.totalorder 2, %s9
    // Predicated region
    $region37: #{patch_embedding_forward.1} parent=5 // pred_check
      %p393 = pneg %p392
    $region38: #{patch_embedding_forward.1} parent=5 // pred_check_branch
      %395 = sbr.rel (%p393) target = $region40
    $region39: #{patch_embedding_forward.1} parent=5 // pred_region
      %s396 = ssub.s32 %s9, 2
      // Predicated region
      $region41: #{patch_embedding_forward.1} parent=39 // pred_check
        %p397 = pneg %p143
      $region42: #{patch_embedding_forward.1} parent=39 // pred_check_branch
        %399 = sbr.rel (%p397) target = $region44
      $region43: #{patch_embedding_forward.1} parent=39 // pred_region
        %s400 = smul.u32 3, %s22
        %p401 = scmp.lt.s32.totalorder %s24, 1
        %s402 = scalar_select %p401, %s24, 1
        %p403 = scmp.lt.s32.totalorder %s400, 2
        %s404 = scalar_select %p403, %s400, 2
        %p405 = scmp.lt.s32.totalorder %s23, 0
        %s406 = scalar_select %p405, %s23, 0
        %s407 = sadd.s32 %s406, %s404
        %s408 = smul.addr %s402, 3
        %s409 = sadd.s32 %s407, %s408
        %s410 = smul.addr %s409, 8
        %s411 = scalar_lea.vmem %s3, %s410
      $region44: #{patch_embedding_forward.1} parent=39 // pred_fallthru
        _
    $region40: #{patch_embedding_forward.1} parent=5 // pred_fallthru
      _
  $region6: #{patch_embedding_forward.1} parent=0 // loop_footer
    %s13 = sadd.s32 1, %s9
  $region7: #{patch_embedding_forward.1} parent=0 // loop_footer_branch
    %8 = sbr.rel target = $region3
  $region8: #{patch_embedding_forward.1} parent=0 // loop_exit
    _

</llo_original>
